<compile_context>
chip_gen: v7x
topology: tpu7x:2x2x1
jax: 0.10.0
libtpu: 0.0.40
codegen_flags: <defaults>
</compile_context>

<pallas_src>
import jax
import jax.numpy as jnp
from jax import lax
from jax.experimental import pallas as pl
from jax.experimental.pallas import tpu as pltpu


def _linear_kernel(x_ref, wt_ref, b_ref, o_ref):
    """y = x @ Wt + b ; x:(B,K) bf16, wt:(K,N) bf16, b:(1,N) f32, o:(B,N) f32."""
    y = lax.dot_general(
        x_ref[...],
        wt_ref[...],
        dimension_numbers=(((1,), (0,)), ((), ())),  # plain (M,K)x(K,N)
        preferred_element_type=jnp.float32,          # f32 accumulation on MXU
    )
    o_ref[...] = (y + b_ref[...]).astype(o_ref.dtype)


def classification_head(x, weight, bias):
    """x: (B, in_ch), weight: (out_dim, in_ch) [PyTorch nn.Linear layout],
    bias: (out_dim,).  Returns (B, out_dim) f32 logits.

    Wrapper-side (one-time, outside the kernel):
      - transpose W -> (in_ch, out_dim) so the kernel is a canonical MXU matmul
      - cast x / W to bf16 to halve DMA bytes and skip f32 MXU emulation
    Kernel: single grid step, everything resident in VMEM, f32 epilogue.
    """
    B, K = x.shape
    N, Kw = weight.shape
    assert K == Kw, "feature dims must match"

    x_bf16 = x.astype(jnp.bfloat16)
    wt_bf16 = weight.T.astype(jnp.bfloat16)          # (K, N), hoisted transpose
    bias2d = bias.astype(jnp.float32).reshape(1, N)  # bias add stays f32

    out_dtype = jnp.float32
    bytes_accessed = (
        x_bf16.size * 2 + wt_bf16.size * 2 + bias2d.size * 4 + B * N * 4
    )
    cost = pl.CostEstimate(
        flops=2 * B * K * N,
        transcendentals=0,
        bytes_accessed=bytes_accessed,
    )

    vmem = pl.BlockSpec(memory_space=pltpu.MemorySpace.VMEM)
    return pl.pallas_call(
        _linear_kernel,
        out_shape=jax.ShapeDtypeStruct((B, N), out_dtype),
        in_specs=[vmem, vmem, vmem],
        out_specs=pl.BlockSpec(memory_space=pltpu.MemorySpace.VMEM),
        cost_estimate=cost,
    )(x_bf16, wt_bf16, bias2d)


if __name__ == "__main__":
    B = 8          # batch
    IN_CH = 1536   # module default in_ch
    OUT_DIM = 16   # out_dim

    key = jax.random.PRNGKey(0)
    kx, kw, kb = jax.random.split(key, 3)

    # Deterministic synthetic parameters with nn.Linear(in_ch, out_dim) shapes.
    x = jax.random.normal(kx, (B, IN_CH), dtype=jnp.float32)
    weight = jax.random.normal(kw, (OUT_DIM, IN_CH), dtype=jnp.float32) * 0.02
    bias = jax.random.normal(kb, (OUT_DIM,), dtype=jnp.float32) * 0.02

    # TODO(synk): training-mode dropout (stochastic masking with p=0.5) not
    # applied; forward is reproduced in eval semantics where dropout is identity.
    out = classification_head(x, weight, bias)
    out = jax.block_until_ready(out)
    assert out.shape == (B, OUT_DIM)

    # Reference 1: bf16-rounded operands, f32 accumulation (what the kernel does).
    xb = x.astype(jnp.bfloat16).astype(jnp.float32)
    wb = weight.astype(jnp.bfloat16).astype(jnp.float32)
    ref_bf16 = xb @ wb.T + bias
    assert jnp.allclose(out, ref_bf16, atol=2e-3, rtol=2e-3)

    # Reference 2: full f32 math — looser tolerance accounts for bf16 inputs.
    ref_f32 = x @ weight.T + bias
    assert jnp.allclose(out, ref_f32, atol=2e-2, rtol=2e-2)

    print("KERNEL_OK")
</pallas_src>

<mosaic_0001>
module attributes {stable_mosaic.version = 11 : i64} {
  func.func @_linear_kernel(%arg0: memref<8x1536xbf16, #tpu.memory_space<vmem>>, %arg1: memref<1536x16xbf16, #tpu.memory_space<vmem>>, %arg2: memref<1x16xf32, #tpu.memory_space<vmem>>, %arg3: memref<8x16xf32, #tpu.memory_space<vmem>>) attributes {dimension_semantics = [], scalar_prefetch = 0 : i64, scratch_operands = 0 : i64, tpu.core_type = #tpu.core_type<tc>} {
    %c0 = arith.constant 0 : index
    %c0_0 = arith.constant 0 : index
    %0 = vector.load %arg0[%c0, %c0_0] : memref<8x1536xbf16, #tpu.memory_space<vmem>>, vector<8x1536xbf16>
    %c0_1 = arith.constant 0 : index
    %c0_2 = arith.constant 0 : index
    %1 = vector.load %arg1[%c0_1, %c0_2] : memref<1536x16xbf16, #tpu.memory_space<vmem>>, vector<1536x16xbf16>
    %cst = arith.constant dense<0.000000e+00> : vector<8x16xf32>
    %2 = tpu.matmul %0, %1, %cst {dimension_numbers = #tpu.dot_dimension_numbers<[1], [0], [0], [1], [0, 0, 1, 1], [], []>} : vector<8x1536xbf16>, vector<1536x16xbf16>, vector<8x16xf32> -> vector<8x16xf32>
    %c0_3 = arith.constant 0 : index
    %c0_4 = arith.constant 0 : index
    %3 = vector.load %arg2[%c0_3, %c0_4] : memref<1x16xf32, #tpu.memory_space<vmem>>, vector<1x16xf32>
    %4 = vector.broadcast %3 : vector<1x16xf32> to vector<8x16xf32>
    %5 = arith.addf %2, %4 : vector<8x16xf32>
    %c0_5 = arith.constant 0 : index
    %c0_6 = arith.constant 0 : index
    %6 = vector.load %arg3[%c0_5, %c0_6] : memref<8x16xf32, #tpu.memory_space<vmem>>, vector<8x16xf32>
    tpu.vector_store %arg3[%c0_5, %c0_6], %5 {strides = array<i32>} : memref<8x16xf32, #tpu.memory_space<vmem>>, vector<8x16xf32>,
    return
  }
}

</mosaic_0001>

<llo_original>
// kernel: tpu_custom_call.1
$region0: #{tpu_custom_call.1}
  #allocation0 [shape = 'u32[]', space=smem, size = 0x4, offset = 0x4, fixed_abs, tag = 'smem constant byte address 0x4 - core index']
  #allocation1 [shape = 'u32[144,128]{1,0:T(1,128)}', space=vmem, size = 0x12000, scoped, tag = 'internal scratch']
  %s0 = inlined_call_operand.vmem [shape: bf16[8,1536], index: 0, kind: input, shape index: {}]
  %s1 = inlined_call_operand.vmem [shape: bf16[1536,16], index: 1, kind: input, shape index: {}]
  %s2 = inlined_call_operand.vmem [shape: f32[1,16], index: 2, kind: input, shape index: {}]
  %s3 = inlined_call_operand.hbm [shape: f32[8,16], index: 3, kind: output, shape index: {}]
  %s4 = sld [smem:[#allocation0]]
  $region22: #{tpu_custom_call.1} parent=0
    _
  %s6 = ssub.s32 1, %s4
  %s7 = scalar_select 0, %s6, %s4
  $region1: #{tpu_custom_call.1} parent=0
    #allocation2 [shape = 'u8[4096]{0}', space=vmem, size = 0x1000, scoped, tag = 'output window, operand 0, single buffered']
    #allocation3 [shape = 's32[1]{0}', space=sflag, size = 0x4, scoped, tag = 'scoped memory for tpu_custom_call.1']
    %8 = vsyncpa [#allocation3], 0
    // Predicated region
    $region2: #{tpu_custom_call.1} parent=1 // pred_check
      _
    $region3: #{tpu_custom_call.1} parent=1 // pred_check_branch
      %10 = sbr.rel (0) target = $region5
    $region4: #{tpu_custom_call.1} parent=1 // pred_region
      _
    $region5: #{tpu_custom_call.1} parent=1 // pred_fallthru
      _
    // Predicated region
    $region6: #{tpu_custom_call.1} parent=1 // pred_check
      _
    $region7: #{tpu_custom_call.1} parent=1 // pred_check_branch
      %12 = sbr.rel (0) target = $region9
    $region8: #{tpu_custom_call.1} parent=1 // pred_region
      _
    $region9: #{tpu_custom_call.1} parent=1 // pred_fallthru
      _
    // Predicated region
    $region10: #{tpu_custom_call.1} parent=1 // pred_check
      _
    $region11: #{tpu_custom_call.1} parent=1 // pred_check_branch
      %14 = sbr.rel (0) target = $region13
    $region12: #{tpu_custom_call.1} parent=1 // pred_region
      _
    $region13: #{tpu_custom_call.1} parent=1 // pred_fallthru
      _
    %v16 = vld [vmem:[%s0] sm:$0xff]
    %v17 = vld [vmem:[%s0 + $0x8] sm:$0xff]
    %v18 = vld [vmem:[%s0 + $0x10] sm:$0xff]
    %v19 = vld [vmem:[%s0 + $0x18] sm:$0xff]
    %v20 = vld [vmem:[%s0 + $0x20] sm:$0xff]
    %v21 = vld [vmem:[%s0 + $0x28] sm:$0xff]
    %v22 = vld [vmem:[%s1] sm:$0xf]
    %v23 = vld [vmem:[%s1 + $0x4] sm:$0xf]
    %v24 = vld [vmem:[%s1 + $0x8] sm:$0xf]
    %v25 = vld [vmem:[%s1 + $0xc] sm:$0xf]
    %v26 = vld [vmem:[%s1 + $0x10] sm:$0xf]
    %v27 = vld [vmem:[%s1 + $0x14] sm:$0xf]
    %v28 = vld [vmem:[%s1 + $0x18] sm:$0xf]
    %v29 = vld [vmem:[%s1 + $0x1c] sm:$0xf]
    %v30 = vld [vmem:[%s1 + $0x20] sm:$0xf]
    %v31 = vld [vmem:[%s1 + $0x24] sm:$0xf]
    %v32 = vld [vmem:[%s1 + $0x28] sm:$0xf]
    %v33 = vld [vmem:[%s1 + $0x2c] sm:$0xf]
    %v34 = vld [vmem:[%s1 + $0x30] sm:$0xf]
    %v35 = vld [vmem:[%s1 + $0x34] sm:$0xf]
    %v36 = vld [vmem:[%s1 + $0x38] sm:$0xf]
    %v37 = vld [vmem:[%s1 + $0x3c] sm:$0xf]
    %v38 = vld [vmem:[%s1 + $0x40] sm:$0xf]
    %v39 = vld [vmem:[%s1 + $0x44] sm:$0xf]
    %v40 = vld [vmem:[%s1 + $0x48] sm:$0xf]
    %v41 = vld [vmem:[%s1 + $0x4c] sm:$0xf]
    %v42 = vld [vmem:[%s1 + $0x50] sm:$0xf]
    %v43 = vld [vmem:[%s1 + $0x54] sm:$0xf]
    %v44 = vld [vmem:[%s1 + $0x58] sm:$0xf]
    %v45 = vld [vmem:[%s1 + $0x5c] sm:$0xf]
    %v46 = vld [vmem:[%s1 + $0x60] sm:$0xf]
    %v47 = vld [vmem:[%s1 + $0x64] sm:$0xf]
    %v48 = vld [vmem:[%s1 + $0x68] sm:$0xf]
    %v49 = vld [vmem:[%s1 + $0x6c] sm:$0xf]
    %v50 = vld [vmem:[%s1 + $0x70] sm:$0xf]
    %v51 = vld [vmem:[%s1 + $0x74] sm:$0xf]
    %v52 = vld [vmem:[%s1 + $0x78] sm:$0xf]
    %v53 = vld [vmem:[%s1 + $0x7c] sm:$0xf]
    %v54 = vld [vmem:[%s1 + $0x80] sm:$0xf]
    %v55 = vld [vmem:[%s1 + $0x84] sm:$0xf]
    %v56 = vld [vmem:[%s1 + $0x88] sm:$0xf]
    %v57 = vld [vmem:[%s1 + $0x8c] sm:$0xf]
    %v58 = vld [vmem:[%s1 + $0x90] sm:$0xf]
    %v59 = vld [vmem:[%s1 + $0x94] sm:$0xf]
    %v60 = vld [vmem:[%s1 + $0x98] sm:$0xf]
    %v61 = vld [vmem:[%s1 + $0x9c] sm:$0xf]
    %v62 = vld [vmem:[%s1 + $0xa0] sm:$0xf]
    %v63 = vld [vmem:[%s1 + $0xa4] sm:$0xf]
    %v64 = vld [vmem:[%s1 + $0xa8] sm:$0xf]
    %v65 = vld [vmem:[%s1 + $0xac] sm:$0xf]
    %v66 = vld [vmem:[%s1 + $0xb0] sm:$0xf]
    %v67 = vld [vmem:[%s1 + $0xb4] sm:$0xf]
    %v68 = vld [vmem:[%s1 + $0xb8] sm:$0xf]
    %v69 = vld [vmem:[%s1 + $0xbc] sm:$0xf]
    %v70 = vld [vmem:[%s1 + $0xc0] sm:$0xf]
    %v71 = vld [vmem:[%s1 + $0xc4] sm:$0xf]
    %v72 = vld [vmem:[%s1 + $0xc8] sm:$0xf]
    %v73 = vld [vmem:[%s1 + $0xcc] sm:$0xf]
    %v74 = vld [vmem:[%s1 + $0xd0] sm:$0xf]
    %v75 = vld [vmem:[%s1 + $0xd4] sm:$0xf]
    %v76 = vld [vmem:[%s1 + $0xd8] sm:$0xf]
    %v77 = vld [vmem:[%s1 + $0xdc] sm:$0xf]
    %v78 = vld [vmem:[%s1 + $0xe0] sm:$0xf]
    %v79 = vld [vmem:[%s1 + $0xe4] sm:$0xf]
    %v80 = vld [vmem:[%s1 + $0xe8] sm:$0xf]
    %v81 = vld [vmem:[%s1 + $0xec] sm:$0xf]
    %v82 = vld [vmem:[%s1 + $0xf0] sm:$0xf]
    %v83 = vld [vmem:[%s1 + $0xf4] sm:$0xf]
    %v84 = vld [vmem:[%s1 + $0xf8] sm:$0xf]
    %v85 = vld [vmem:[%s1 + $0xfc] sm:$0xf]
    %v86 = vld [vmem:[%s1 + $0x100] sm:$0xf]
    %v87 = vld [vmem:[%s1 + $0x104] sm:$0xf]
    %v88 = vld [vmem:[%s1 + $0x108] sm:$0xf]
    %v89 = vld [vmem:[%s1 + $0x10c] sm:$0xf]
    %v90 = vld [vmem:[%s1 + $0x110] sm:$0xf]
    %v91 = vld [vmem:[%s1 + $0x114] sm:$0xf]
    %v92 = vld [vmem:[%s1 + $0x118] sm:$0xf]
    %v93 = vld [vmem:[%s1 + $0x11c] sm:$0xf]
    %v94 = vld [vmem:[%s1 + $0x120] sm:$0xf]
    %v95 = vld [vmem:[%s1 + $0x124] sm:$0xf]
    %v96 = vld [vmem:[%s1 + $0x128] sm:$0xf]
    %v97 = vld [vmem:[%s1 + $0x12c] sm:$0xf]
    %v98 = vld [vmem:[%s1 + $0x130] sm:$0xf]
    %v99 = vld [vmem:[%s1 + $0x134] sm:$0xf]
    %v100 = vld [vmem:[%s1 + $0x138] sm:$0xf]
    %v101 = vld [vmem:[%s1 + $0x13c] sm:$0xf]
    %v102 = vld [vmem:[%s1 + $0x140] sm:$0xf]
    %v103 = vld [vmem:[%s1 + $0x144] sm:$0xf]
    %v104 = vld [vmem:[%s1 + $0x148] sm:$0xf]
    %v105 = vld [vmem:[%s1 + $0x14c] sm:$0xf]
    %v106 = vld [vmem:[%s1 + $0x150] sm:$0xf]
    %v107 = vld [vmem:[%s1 + $0x154] sm:$0xf]
    %v108 = vld [vmem:[%s1 + $0x158] sm:$0xf]
    %v109 = vld [vmem:[%s1 + $0x15c] sm:$0xf]
    %v110 = vld [vmem:[%s1 + $0x160] sm:$0xf]
    %v111 = vld [vmem:[%s1 + $0x164] sm:$0xf]
    %v112 = vld [vmem:[%s1 + $0x168] sm:$0xf]
    %v113 = vld [vmem:[%s1 + $0x16c] sm:$0xf]
    %v114 = vld [vmem:[%s1 + $0x170] sm:$0xf]
    %v115 = vld [vmem:[%s1 + $0x174] sm:$0xf]
    %v116 = vld [vmem:[%s1 + $0x178] sm:$0xf]
    %v117 = vld [vmem:[%s1 + $0x17c] sm:$0xf]
    %v118 = vld [vmem:[%s1 + $0x180] sm:$0xf]
    %v119 = vld [vmem:[%s1 + $0x184] sm:$0xf]
    %v120 = vld [vmem:[%s1 + $0x188] sm:$0xf]
    %v121 = vld [vmem:[%s1 + $0x18c] sm:$0xf]
    %v122 = vld [vmem:[%s1 + $0x190] sm:$0xf]
    %v123 = vld [vmem:[%s1 + $0x194] sm:$0xf]
    %v124 = vld [vmem:[%s1 + $0x198] sm:$0xf]
    %v125 = vld [vmem:[%s1 + $0x19c] sm:$0xf]
    %v126 = vld [vmem:[%s1 + $0x1a0] sm:$0xf]
    %v127 = vld [vmem:[%s1 + $0x1a4] sm:$0xf]
    %v128 = vld [vmem:[%s1 + $0x1a8] sm:$0xf]
    %v129 = vld [vmem:[%s1 + $0x1ac] sm:$0xf]
    %v130 = vld [vmem:[%s1 + $0x1b0] sm:$0xf]
    %v131 = vld [vmem:[%s1 + $0x1b4] sm:$0xf]
    %v132 = vld [vmem:[%s1 + $0x1b8] sm:$0xf]
    %v133 = vld [vmem:[%s1 + $0x1bc] sm:$0xf]
    %v134 = vld [vmem:[%s1 + $0x1c0] sm:$0xf]
    %v135 = vld [vmem:[%s1 + $0x1c4] sm:$0xf]
    %v136 = vld [vmem:[%s1 + $0x1c8] sm:$0xf]
    %v137 = vld [vmem:[%s1 + $0x1cc] sm:$0xf]
    %v138 = vld [vmem:[%s1 + $0x1d0] sm:$0xf]
    %v139 = vld [vmem:[%s1 + $0x1d4] sm:$0xf]
    %v140 = vld [vmem:[%s1 + $0x1d8] sm:$0xf]
    %v141 = vld [vmem:[%s1 + $0x1dc] sm:$0xf]
    %v142 = vld [vmem:[%s1 + $0x1e0] sm:$0xf]
    %v143 = vld [vmem:[%s1 + $0x1e4] sm:$0xf]
    %v144 = vld [vmem:[%s1 + $0x1e8] sm:$0xf]
    %v145 = vld [vmem:[%s1 + $0x1ec] sm:$0xf]
    %v146 = vld [vmem:[%s1 + $0x1f0] sm:$0xf]
    %v147 = vld [vmem:[%s1 + $0x1f4] sm:$0xf]
    %v148 = vld [vmem:[%s1 + $0x1f8] sm:$0xf]
    %v149 = vld [vmem:[%s1 + $0x1fc] sm:$0xf]
    %v150 = vld [vmem:[%s1 + $0x200] sm:$0xf]
    %v151 = vld [vmem:[%s1 + $0x204] sm:$0xf]
    %v152 = vld [vmem:[%s1 + $0x208] sm:$0xf]
    %v153 = vld [vmem:[%s1 + $0x20c] sm:$0xf]
    %v154 = vld [vmem:[%s1 + $0x210] sm:$0xf]
    %v155 = vld [vmem:[%s1 + $0x214] sm:$0xf]
    %v156 = vld [vmem:[%s1 + $0x218] sm:$0xf]
    %v157 = vld [vmem:[%s1 + $0x21c] sm:$0xf]
    %v158 = vld [vmem:[%s1 + $0x220] sm:$0xf]
    %v159 = vld [vmem:[%s1 + $0x224] sm:$0xf]
    %v160 = vld [vmem:[%s1 + $0x228] sm:$0xf]
    %v161 = vld [vmem:[%s1 + $0x22c] sm:$0xf]
    %v162 = vld [vmem:[%s1 + $0x230] sm:$0xf]
    %v163 = vld [vmem:[%s1 + $0x234] sm:$0xf]
    %v164 = vld [vmem:[%s1 + $0x238] sm:$0xf]
    %v165 = vld [vmem:[%s1 + $0x23c] sm:$0xf]
    %v166 = vld [vmem:[%s1 + $0x240] sm:$0xf]
    %v167 = vld [vmem:[%s1 + $0x244] sm:$0xf]
    %v168 = vld [vmem:[%s1 + $0x248] sm:$0xf]
    %v169 = vld [vmem:[%s1 + $0x24c] sm:$0xf]
    %v170 = vld [vmem:[%s1 + $0x250] sm:$0xf]
    %v171 = vld [vmem:[%s1 + $0x254] sm:$0xf]
    %v172 = vld [vmem:[%s1 + $0x258] sm:$0xf]
    %v173 = vld [vmem:[%s1 + $0x25c] sm:$0xf]
    %v174 = vld [vmem:[%s1 + $0x260] sm:$0xf]
    %v175 = vld [vmem:[%s1 + $0x264] sm:$0xf]
    %v176 = vld [vmem:[%s1 + $0x268] sm:$0xf]
    %v177 = vld [vmem:[%s1 + $0x26c] sm:$0xf]
    %v178 = vld [vmem:[%s1 + $0x270] sm:$0xf]
    %v179 = vld [vmem:[%s1 + $0x274] sm:$0xf]
    %v180 = vld [vmem:[%s1 + $0x278] sm:$0xf]
    %v181 = vld [vmem:[%s1 + $0x27c] sm:$0xf]
    %v182 = vld [vmem:[%s1 + $0x280] sm:$0xf]
    %v183 = vld [vmem:[%s1 + $0x284] sm:$0xf]
    %v184 = vld [vmem:[%s1 + $0x288] sm:$0xf]
    %v185 = vld [vmem:[%s1 + $0x28c] sm:$0xf]
    %v186 = vld [vmem:[%s1 + $0x290] sm:$0xf]
    %v187 = vld [vmem:[%s1 + $0x294] sm:$0xf]
    %v188 = vld [vmem:[%s1 + $0x298] sm:$0xf]
    %v189 = vld [vmem:[%s1 + $0x29c] sm:$0xf]
    %v190 = vld [vmem:[%s1 + $0x2a0] sm:$0xf]
    %v191 = vld [vmem:[%s1 + $0x2a4] sm:$0xf]
    %v192 = vld [vmem:[%s1 + $0x2a8] sm:$0xf]
    %v193 = vld [vmem:[%s1 + $0x2ac] sm:$0xf]
    %v194 = vld [vmem:[%s1 + $0x2b0] sm:$0xf]
    %v195 = vld [vmem:[%s1 + $0x2b4] sm:$0xf]
    %v196 = vld [vmem:[%s1 + $0x2b8] sm:$0xf]
    %v197 = vld [vmem:[%s1 + $0x2bc] sm:$0xf]
    %v198 = vld [vmem:[%s1 + $0x2c0] sm:$0xf]
    %v199 = vld [vmem:[%s1 + $0x2c4] sm:$0xf]
    %v200 = vld [vmem:[%s1 + $0x2c8] sm:$0xf]
    %v201 = vld [vmem:[%s1 + $0x2cc] sm:$0xf]
    %v202 = vld [vmem:[%s1 + $0x2d0] sm:$0xf]
    %v203 = vld [vmem:[%s1 + $0x2d4] sm:$0xf]
    %v204 = vld [vmem:[%s1 + $0x2d8] sm:$0xf]
    %v205 = vld [vmem:[%s1 + $0x2dc] sm:$0xf]
    %v206 = vld [vmem:[%s1 + $0x2e0] sm:$0xf]
    %v207 = vld [vmem:[%s1 + $0x2e4] sm:$0xf]
    %v208 = vld [vmem:[%s1 + $0x2e8] sm:$0xf]
    %v209 = vld [vmem:[%s1 + $0x2ec] sm:$0xf]
    %v210 = vld [vmem:[%s1 + $0x2f0] sm:$0xf]
    %v211 = vld [vmem:[%s1 + $0x2f4] sm:$0xf]
    %v212 = vld [vmem:[%s1 + $0x2f8] sm:$0xf]
    %v213 = vld [vmem:[%s1 + $0x2fc] sm:$0xf]
    %v214 = vld [vmem:[%s2] sm:$0x1]
    %v216 = vlaneseq
    %v217 = vshrl.u32 %v216, 7
    %v218 = vsub.s32 0, %v217
    %v219 = vrot.slane %v214, %v218
    %v227 = vunpack.c.l.b16 %v16
    %v228 = vunpack.c.h.b16 %v16
    %v229 = vunpack.c.l.b16 %v17
    %v230 = vunpack.c.h.b16 %v17
    %v231 = vunpack.c.l.b16 %v18
    %v232 = vunpack.c.h.b16 %v18
    %v233 = vunpack.c.l.b16 %v19
    %v234 = vunpack.c.h.b16 %v19
    %v235 = vunpack.c.l.b16 %v20
    %v236 = vunpack.c.h.b16 %v20
    %v237 = vunpack.c.l.b16 %v21
    %v238 = vunpack.c.h.b16 %v21
    %v239 = vpack.c.b16 %v227, %v227
    %v240 = vpack.c.b16 %v228, %v228
    %v241 = vpack.c.b16 %v229, %v229
    %v242 = vpack.c.b16 %v230, %v230
    %v243 = vpack.c.b16 %v231, %v231
    %v244 = vpack.c.b16 %v232, %v232
    %v245 = vpack.c.b16 %v233, %v233
    %v246 = vpack.c.b16 %v234, %v234
    %v247 = vpack.c.b16 %v235, %v235
    %v248 = vpack.c.b16 %v236, %v236
    %v249 = vpack.c.b16 %v237, %v237
    %v250 = vpack.c.b16 %v238, %v238
    %v455 = vunpack.c.l.b16 %v22
    %v456 = vunpack.c.l.b16 %v23
    %v457 = vunpack.c.l.b16 %v24
    %v458 = vunpack.c.l.b16 %v25
    %v459 = vunpack.c.l.b16 %v26
    %v460 = vunpack.c.l.b16 %v27
    %v461 = vunpack.c.l.b16 %v28
    %v462 = vunpack.c.l.b16 %v29
    %v463 = vunpack.c.l.b16 %v30
    %v464 = vunpack.c.l.b16 %v31
    %v465 = vunpack.c.l.b16 %v32
    %v466 = vunpack.c.l.b16 %v33
    %v467 = vunpack.c.l.b16 %v34
    %v468 = vunpack.c.l.b16 %v35
    %v469 = vunpack.c.l.b16 %v36
    %v470 = vunpack.c.l.b16 %v37
    %v471 = vunpack.c.l.b16 %v38
    %v472 = vunpack.c.l.b16 %v39
    %v473 = vunpack.c.l.b16 %v40
    %v474 = vunpack.c.l.b16 %v41
    %v475 = vunpack.c.l.b16 %v42
    %v476 = vunpack.c.l.b16 %v43
    %v477 = vunpack.c.l.b16 %v44
    %v478 = vunpack.c.l.b16 %v45
    %v479 = vunpack.c.l.b16 %v46
    %v480 = vunpack.c.l.b16 %v47
    %v481 = vunpack.c.l.b16 %v48
    %v482 = vunpack.c.l.b16 %v49
    %v483 = vunpack.c.l.b16 %v50
    %v484 = vunpack.c.l.b16 %v51
    %v485 = vunpack.c.l.b16 %v52
    %v486 = vunpack.c.l.b16 %v53
    %v487 = vunpack.c.l.b16 %v54
    %v488 = vunpack.c.l.b16 %v55
    %v489 = vunpack.c.l.b16 %v56
    %v490 = vunpack.c.l.b16 %v57
    %v491 = vunpack.c.l.b16 %v58
    %v492 = vunpack.c.l.b16 %v59
    %v493 = vunpack.c.l.b16 %v60
    %v494 = vunpack.c.l.b16 %v61
    %v495 = vunpack.c.l.b16 %v62
    %v496 = vunpack.c.l.b16 %v63
    %v497 = vunpack.c.l.b16 %v64
    %v498 = vunpack.c.l.b16 %v65
    %v499 = vunpack.c.l.b16 %v66
    %v500 = vunpack.c.l.b16 %v67
    %v501 = vunpack.c.l.b16 %v68
    %v502 = vunpack.c.l.b16 %v69
    %v503 = vunpack.c.l.b16 %v70
    %v504 = vunpack.c.l.b16 %v71
    %v505 = vunpack.c.l.b16 %v72
    %v506 = vunpack.c.l.b16 %v73
    %v507 = vunpack.c.l.b16 %v74
    %v508 = vunpack.c.l.b16 %v75
    %v509 = vunpack.c.l.b16 %v76
    %v510 = vunpack.c.l.b16 %v77
    %v511 = vunpack.c.l.b16 %v78
    %v512 = vunpack.c.l.b16 %v79
    %v513 = vunpack.c.l.b16 %v80
    %v514 = vunpack.c.l.b16 %v81
    %v515 = vunpack.c.l.b16 %v82
    %v516 = vunpack.c.l.b16 %v83
    %v517 = vunpack.c.l.b16 %v84
    %v518 = vunpack.c.l.b16 %v85
    %v519 = vunpack.c.l.b16 %v86
    %v520 = vunpack.c.l.b16 %v87
    %v521 = vunpack.c.l.b16 %v88
    %v522 = vunpack.c.l.b16 %v89
    %v523 = vunpack.c.l.b16 %v90
    %v524 = vunpack.c.l.b16 %v91
    %v525 = vunpack.c.l.b16 %v92
    %v526 = vunpack.c.l.b16 %v93
    %v527 = vunpack.c.l.b16 %v94
    %v528 = vunpack.c.l.b16 %v95
    %v529 = vunpack.c.l.b16 %v96
    %v530 = vunpack.c.l.b16 %v97
    %v531 = vunpack.c.l.b16 %v98
    %v532 = vunpack.c.l.b16 %v99
    %v533 = vunpack.c.l.b16 %v100
    %v534 = vunpack.c.l.b16 %v101
    %v535 = vunpack.c.l.b16 %v102
    %v536 = vunpack.c.l.b16 %v103
    %v537 = vunpack.c.l.b16 %v104
    %v538 = vunpack.c.l.b16 %v105
    %v539 = vunpack.c.l.b16 %v106
    %v540 = vunpack.c.l.b16 %v107
    %v541 = vunpack.c.l.b16 %v108
    %v542 = vunpack.c.l.b16 %v109
    %v543 = vunpack.c.l.b16 %v110
    %v544 = vunpack.c.l.b16 %v111
    %v545 = vunpack.c.l.b16 %v112
    %v546 = vunpack.c.l.b16 %v113
    %v547 = vunpack.c.l.b16 %v114
    %v548 = vunpack.c.l.b16 %v115
    %v549 = vunpack.c.l.b16 %v116
    %v550 = vunpack.c.l.b16 %v117
    %v551 = vunpack.c.l.b16 %v118
    %v552 = vunpack.c.l.b16 %v119
    %v553 = vunpack.c.l.b16 %v120
    %v554 = vunpack.c.l.b16 %v121
    %v555 = vunpack.c.l.b16 %v122
    %v556 = vunpack.c.l.b16 %v123
    %v557 = vunpack.c.l.b16 %v124
    %v558 = vunpack.c.l.b16 %v125
    %v559 = vunpack.c.l.b16 %v126
    %v560 = vunpack.c.l.b16 %v127
    %v561 = vunpack.c.l.b16 %v128
    %v562 = vunpack.c.l.b16 %v129
    %v563 = vunpack.c.l.b16 %v130
    %v564 = vunpack.c.l.b16 %v131
    %v565 = vunpack.c.l.b16 %v132
    %v566 = vunpack.c.l.b16 %v133
    %v567 = vunpack.c.l.b16 %v134
    %v568 = vunpack.c.l.b16 %v135
    %v569 = vunpack.c.l.b16 %v136
    %v570 = vunpack.c.l.b16 %v137
    %v571 = vunpack.c.l.b16 %v138
    %v572 = vunpack.c.l.b16 %v139
    %v573 = vunpack.c.l.b16 %v140
    %v574 = vunpack.c.l.b16 %v141
    %v575 = vunpack.c.l.b16 %v142
    %v576 = vunpack.c.l.b16 %v143
    %v577 = vunpack.c.l.b16 %v144
    %v578 = vunpack.c.l.b16 %v145
    %v579 = vunpack.c.l.b16 %v146
    %v580 = vunpack.c.l.b16 %v147
    %v581 = vunpack.c.l.b16 %v148
    %v582 = vunpack.c.l.b16 %v149
    %v583 = vunpack.c.l.b16 %v150
    %v584 = vunpack.c.l.b16 %v151
    %v585 = vunpack.c.l.b16 %v152
    %v586 = vunpack.c.l.b16 %v153
    %v587 = vunpack.c.l.b16 %v154
    %v588 = vunpack.c.l.b16 %v155
    %v589 = vunpack.c.l.b16 %v156
    %v590 = vunpack.c.l.b16 %v157
    %v591 = vunpack.c.l.b16 %v158
    %v592 = vunpack.c.l.b16 %v159
    %v593 = vunpack.c.l.b16 %v160
    %v594 = vunpack.c.l.b16 %v161
    %v595 = vunpack.c.l.b16 %v162
    %v596 = vunpack.c.l.b16 %v163
    %v597 = vunpack.c.l.b16 %v164
    %v598 = vunpack.c.l.b16 %v165
    %v599 = vunpack.c.l.b16 %v166
    %v600 = vunpack.c.l.b16 %v167
    %v601 = vunpack.c.l.b16 %v168
    %v602 = vunpack.c.l.b16 %v169
    %v603 = vunpack.c.l.b16 %v170
    %v604 = vunpack.c.l.b16 %v171
    %v605 = vunpack.c.l.b16 %v172
    %v606 = vunpack.c.l.b16 %v173
    %v607 = vunpack.c.l.b16 %v174
    %v608 = vunpack.c.l.b16 %v175
    %v609 = vunpack.c.l.b16 %v176
    %v610 = vunpack.c.l.b16 %v177
    %v611 = vunpack.c.l.b16 %v178
    %v612 = vunpack.c.l.b16 %v179
    %v613 = vunpack.c.l.b16 %v180
    %v614 = vunpack.c.l.b16 %v181
    %v615 = vunpack.c.l.b16 %v182
    %v616 = vunpack.c.l.b16 %v183
    %v617 = vunpack.c.l.b16 %v184
    %v618 = vunpack.c.l.b16 %v185
    %v619 = vunpack.c.l.b16 %v186
    %v620 = vunpack.c.l.b16 %v187
    %v621 = vunpack.c.l.b16 %v188
    %v622 = vunpack.c.l.b16 %v189
    %v623 = vunpack.c.l.b16 %v190
    %v624 = vunpack.c.l.b16 %v191
    %v625 = vunpack.c.l.b16 %v192
    %v626 = vunpack.c.l.b16 %v193
    %v627 = vunpack.c.l.b16 %v194
    %v628 = vunpack.c.l.b16 %v195
    %v629 = vunpack.c.l.b16 %v196
    %v630 = vunpack.c.l.b16 %v197
    %v631 = vunpack.c.l.b16 %v198
    %v632 = vunpack.c.l.b16 %v199
    %v633 = vunpack.c.l.b16 %v200
    %v634 = vunpack.c.l.b16 %v201
    %v635 = vunpack.c.l.b16 %v202
    %v636 = vunpack.c.l.b16 %v203
    %v637 = vunpack.c.l.b16 %v204
    %v638 = vunpack.c.l.b16 %v205
    %v639 = vunpack.c.l.b16 %v206
    %v640 = vunpack.c.l.b16 %v207
    %v641 = vunpack.c.l.b16 %v208
    %v642 = vunpack.c.l.b16 %v209
    %v643 = vunpack.c.l.b16 %v210
    %v644 = vunpack.c.l.b16 %v211
    %v645 = vunpack.c.l.b16 %v212
    %v646 = vunpack.c.l.b16 %v213
    %v647 = vpack.c.b16 %v456, %v455
    %v648 = vpack.c.b16 %v458, %v457
    %v649 = vpack.c.b16 %v460, %v459
    %v650 = vpack.c.b16 %v462, %v461
    %v651 = vpack.c.b16 %v464, %v463
    %v652 = vpack.c.b16 %v466, %v465
    %v653 = vpack.c.b16 %v468, %v467
    %v654 = vpack.c.b16 %v470, %v469
    %v655 = vpack.c.b16 %v472, %v471
    %v656 = vpack.c.b16 %v474, %v473
    %v657 = vpack.c.b16 %v476, %v475
    %v658 = vpack.c.b16 %v478, %v477
    %v659 = vpack.c.b16 %v480, %v479
    %v660 = vpack.c.b16 %v482, %v481
    %v661 = vpack.c.b16 %v484, %v483
    %v662 = vpack.c.b16 %v486, %v485
    %v663 = vpack.c.b16 %v488, %v487
    %v664 = vpack.c.b16 %v490, %v489
    %v665 = vpack.c.b16 %v492, %v491
    %v666 = vpack.c.b16 %v494, %v493
    %v667 = vpack.c.b16 %v496, %v495
    %v668 = vpack.c.b16 %v498, %v497
    %v669 = vpack.c.b16 %v500, %v499
    %v670 = vpack.c.b16 %v502, %v501
    %v671 = vpack.c.b16 %v504, %v503
    %v672 = vpack.c.b16 %v506, %v505
    %v673 = vpack.c.b16 %v508, %v507
    %v674 = vpack.c.b16 %v510, %v509
    %v675 = vpack.c.b16 %v512, %v511
    %v676 = vpack.c.b16 %v514, %v513
    %v677 = vpack.c.b16 %v516, %v515
    %v678 = vpack.c.b16 %v518, %v517
    %v679 = vpack.c.b16 %v520, %v519
    %v680 = vpack.c.b16 %v522, %v521
    %v681 = vpack.c.b16 %v524, %v523
    %v682 = vpack.c.b16 %v526, %v525
    %v683 = vpack.c.b16 %v528, %v527
    %v684 = vpack.c.b16 %v530, %v529
    %v685 = vpack.c.b16 %v532, %v531
    %v686 = vpack.c.b16 %v534, %v533
    %v687 = vpack.c.b16 %v536, %v535
    %v688 = vpack.c.b16 %v538, %v537
    %v689 = vpack.c.b16 %v540, %v539
    %v690 = vpack.c.b16 %v542, %v541
    %v691 = vpack.c.b16 %v544, %v543
    %v692 = vpack.c.b16 %v546, %v545
    %v693 = vpack.c.b16 %v548, %v547
    %v694 = vpack.c.b16 %v550, %v549
    %v695 = vpack.c.b16 %v552, %v551
    %v696 = vpack.c.b16 %v554, %v553
    %v697 = vpack.c.b16 %v556, %v555
    %v698 = vpack.c.b16 %v558, %v557
    %v699 = vpack.c.b16 %v560, %v559
    %v700 = vpack.c.b16 %v562, %v561
    %v701 = vpack.c.b16 %v564, %v563
    %v702 = vpack.c.b16 %v566, %v565
    %v703 = vpack.c.b16 %v568, %v567
    %v704 = vpack.c.b16 %v570, %v569
    %v705 = vpack.c.b16 %v572, %v571
    %v706 = vpack.c.b16 %v574, %v573
    %v707 = vpack.c.b16 %v576, %v575
    %v708 = vpack.c.b16 %v578, %v577
    %v709 = vpack.c.b16 %v580, %v579
    %v710 = vpack.c.b16 %v582, %v581
    %v711 = vpack.c.b16 %v584, %v583
    %v712 = vpack.c.b16 %v586, %v585
    %v713 = vpack.c.b16 %v588, %v587
    %v714 = vpack.c.b16 %v590, %v589
    %v715 = vpack.c.b16 %v592, %v591
    %v716 = vpack.c.b16 %v594, %v593
    %v717 = vpack.c.b16 %v596, %v595
    %v718 = vpack.c.b16 %v598, %v597
    %v719 = vpack.c.b16 %v600, %v599
    %v720 = vpack.c.b16 %v602, %v601
    %v721 = vpack.c.b16 %v604, %v603
    %v722 = vpack.c.b16 %v606, %v605
    %v723 = vpack.c.b16 %v608, %v607
    %v724 = vpack.c.b16 %v610, %v609
    %v725 = vpack.c.b16 %v612, %v611
    %v726 = vpack.c.b16 %v614, %v613
    %v727 = vpack.c.b16 %v616, %v615
    %v728 = vpack.c.b16 %v618, %v617
    %v729 = vpack.c.b16 %v620, %v619
    %v730 = vpack.c.b16 %v622, %v621
    %v731 = vpack.c.b16 %v624, %v623
    %v732 = vpack.c.b16 %v626, %v625
    %v733 = vpack.c.b16 %v628, %v627
    %v734 = vpack.c.b16 %v630, %v629
    %v735 = vpack.c.b16 %v632, %v631
    %v736 = vpack.c.b16 %v634, %v633
    %v737 = vpack.c.b16 %v636, %v635
    %v738 = vpack.c.b16 %v638, %v637
    %v739 = vpack.c.b16 %v640, %v639
    %v740 = vpack.c.b16 %v642, %v641
    %v741 = vpack.c.b16 %v644, %v643
    %v742 = vpack.c.b16 %v646, %v645
    %839 = vmatprep.subr.bf16.mxu0 0
    %840 = vmatpush1.bf16.msra.mxu0 %v647
    %841 = vmatprep.subr.bf16.mxu0 0
    %842 = vmatpush1.bf16.msra.mxu0 %v648
    %843 = vmatprep.subr.bf16.mxu0 0
    %844 = vmatpush1.bf16.msra.mxu0 %v649
    %845 = vmatprep.subr.bf16.mxu0 0
    %846 = vmatpush1.bf16.msra.mxu0 %v650
    %847 = vmatprep.subr.bf16.mxu0 0
    %848 = vmatpush1.bf16.msra.mxu0 %v651
    %849 = vmatprep.subr.bf16.mxu0 0
    %850 = vmatpush1.bf16.msra.mxu0 %v652
    %851 = vmatprep.subr.bf16.mxu0 0
    %852 = vmatpush1.bf16.msra.mxu0 %v653
    %853 = vmatprep.subr.bf16.mxu0 0
    %854 = vmatpush1.bf16.msra.mxu0 %v654
    %855 = vmatprep.subr.bf16.mxu0 0
    %856 = vmatpush1.bf16.msra.mxu0 %v655
    %857 = vmatprep.subr.bf16.mxu0 0
    %858 = vmatpush1.bf16.msra.mxu0 %v656
    %859 = vmatprep.subr.bf16.mxu0 0
    %860 = vmatpush1.bf16.msra.mxu0 %v657
    %861 = vmatprep.subr.bf16.mxu0 0
    %862 = vmatpush1.bf16.msra.mxu0 %v658
    %863 = vmatprep.subr.bf16.mxu0 0
    %864 = vmatpush1.bf16.msra.mxu0 %v659
    %865 = vmatprep.subr.bf16.mxu0 0
    %866 = vmatpush1.bf16.msra.mxu0 %v660
    %867 = vmatprep.subr.bf16.mxu0 0
    %868 = vmatpush1.bf16.msra.mxu0 %v661
    %869 = vmatprep.subr.bf16.mxu0 0
    %870 = vmatpush1.bf16.msra.mxu0 %v662
    %871 = vmatprep.mubr.bf16.mxu0 %v240
    %872 = vmatmul.mubr.bf16.gmra.mrb[0].mxu0 %v239
    %v873 = vpop.f32.mrb[0].mxu0
    %v874 = vadd.f32 %v219, %v873
    %v875 = vpop.f32.mrb[0].mxu0
    %v876 = vpop.f32.mrb[0].mxu0
    %v877 = vpop.f32.mrb[0].mxu0
    %878 = vdwg.mxu0
    %879 = vmatprep.subr.bf16.mxu0 0
    %880 = vmatpush1.bf16.msra.mxu0 %v663
    %881 = vmatprep.subr.bf16.mxu0 0
    %882 = vmatpush1.bf16.msra.mxu0 %v664
    %883 = vmatprep.subr.bf16.mxu0 0
    %884 = vmatpush1.bf16.msra.mxu0 %v665
    %885 = vmatprep.subr.bf16.mxu0 0
    %886 = vmatpush1.bf16.msra.mxu0 %v666
    %887 = vmatprep.subr.bf16.mxu0 0
    %888 = vmatpush1.bf16.msra.mxu0 %v667
    %889 = vmatprep.subr.bf16.mxu0 0
    %890 = vmatpush1.bf16.msra.mxu0 %v668
    %891 = vmatprep.subr.bf16.mxu0 0
    %892 = vmatpush1.bf16.msra.mxu0 %v669
    %893 = vmatprep.subr.bf16.mxu0 0
    %894 = vmatpush1.bf16.msra.mxu0 %v670
    %895 = vmatprep.subr.bf16.mxu0 0
    %896 = vmatpush1.bf16.msra.mxu0 %v671
    %897 = vmatprep.subr.bf16.mxu0 0
    %898 = vmatpush1.bf16.msra.mxu0 %v672
    %899 = vmatprep.subr.bf16.mxu0 0
    %900 = vmatpush1.bf16.msra.mxu0 %v673
    %901 = vmatprep.subr.bf16.mxu0 0
    %902 = vmatpush1.bf16.msra.mxu0 %v674
    %903 = vmatprep.subr.bf16.mxu0 0
    %904 = vmatpush1.bf16.msra.mxu0 %v675
    %905 = vmatprep.subr.bf16.mxu0 0
    %906 = vmatpush1.bf16.msra.mxu0 %v676
    %907 = vmatprep.subr.bf16.mxu0 0
    %908 = vmatpush1.bf16.msra.mxu0 %v677
    %909 = vmatprep.subr.bf16.mxu0 0
    %910 = vmatpush1.bf16.msra.mxu0 %v678
    %911 = vmatprep.mubr.bf16.mxu0 %v242
    %912 = vmatmul.mubr.bf16.gmra.mrb[0].mxu0 %v241
    %v913 = vpop.f32.mrb[0].mxu0
    %v914 = vadd.f32 %v874, %v913
    %v915 = vpop.f32.mrb[0].mxu0
    %v916 = vpop.f32.mrb[0].mxu0
    %v917 = vpop.f32.mrb[0].mxu0
    %918 = vdwg.mxu0
    %919 = vmatprep.subr.bf16.mxu0 0
    %920 = vmatpush1.bf16.msra.mxu0 %v679
    %921 = vmatprep.subr.bf16.mxu0 0
    %922 = vmatpush1.bf16.msra.mxu0 %v680
    %923 = vmatprep.subr.bf16.mxu0 0
    %924 = vmatpush1.bf16.msra.mxu0 %v681
    %925 = vmatprep.subr.bf16.mxu0 0
    %926 = vmatpush1.bf16.msra.mxu0 %v682
    %927 = vmatprep.subr.bf16.mxu0 0
    %928 = vmatpush1.bf16.msra.mxu0 %v683
    %929 = vmatprep.subr.bf16.mxu0 0
    %930 = vmatpush1.bf16.msra.mxu0 %v684
    %931 = vmatprep.subr.bf16.mxu0 0
    %932 = vmatpush1.bf16.msra.mxu0 %v685
    %933 = vmatprep.subr.bf16.mxu0 0
    %934 = vmatpush1.bf16.msra.mxu0 %v686
    %935 = vmatprep.subr.bf16.mxu0 0
    %936 = vmatpush1.bf16.msra.mxu0 %v687
    %937 = vmatprep.subr.bf16.mxu0 0
    %938 = vmatpush1.bf16.msra.mxu0 %v688
    %939 = vmatprep.subr.bf16.mxu0 0
    %940 = vmatpush1.bf16.msra.mxu0 %v689
    %941 = vmatprep.subr.bf16.mxu0 0
    %942 = vmatpush1.bf16.msra.mxu0 %v690
    %943 = vmatprep.subr.bf16.mxu0 0
    %944 = vmatpush1.bf16.msra.mxu0 %v691
    %945 = vmatprep.subr.bf16.mxu0 0
    %946 = vmatpush1.bf16.msra.mxu0 %v692
    %947 = vmatprep.subr.bf16.mxu0 0
    %948 = vmatpush1.bf16.msra.mxu0 %v693
    %949 = vmatprep.subr.bf16.mxu0 0
    %950 = vmatpush1.bf16.msra.mxu0 %v694
    %951 = vmatprep.mubr.bf16.mxu0 %v244
    %952 = vmatmul.mubr.bf16.gmra.mrb[0].mxu0 %v243
    %v953 = vpop.f32.mrb[0].mxu0
    %v954 = vadd.f32 %v914, %v953
    %v955 = vpop.f32.mrb[0].mxu0
    %v956 = vpop.f32.mrb[0].mxu0
    %v957 = vpop.f32.mrb[0].mxu0
    %958 = vdwg.mxu0
    %959 = vmatprep.subr.bf16.mxu0 0
    %960 = vmatpush1.bf16.msra.mxu0 %v695
    %961 = vmatprep.subr.bf16.mxu0 0
    %962 = vmatpush1.bf16.msra.mxu0 %v696
    %963 = vmatprep.subr.bf16.mxu0 0
    %964 = vmatpush1.bf16.msra.mxu0 %v697
    %965 = vmatprep.subr.bf16.mxu0 0
    %966 = vmatpush1.bf16.msra.mxu0 %v698
    %967 = vmatprep.subr.bf16.mxu0 0
    %968 = vmatpush1.bf16.msra.mxu0 %v699
    %969 = vmatprep.subr.bf16.mxu0 0
    %970 = vmatpush1.bf16.msra.mxu0 %v700
    %971 = vmatprep.subr.bf16.mxu0 0
    %972 = vmatpush1.bf16.msra.mxu0 %v701
    %973 = vmatprep.subr.bf16.mxu0 0
    %974 = vmatpush1.bf16.msra.mxu0 %v702
    %975 = vmatprep.subr.bf16.mxu0 0
    %976 = vmatpush1.bf16.msra.mxu0 %v703
    %977 = vmatprep.subr.bf16.mxu0 0
    %978 = vmatpush1.bf16.msra.mxu0 %v704
    %979 = vmatprep.subr.bf16.mxu0 0
    %980 = vmatpush1.bf16.msra.mxu0 %v705
    %981 = vmatprep.subr.bf16.mxu0 0
    %982 = vmatpush1.bf16.msra.mxu0 %v706
    %983 = vmatprep.subr.bf16.mxu0 0
    %984 = vmatpush1.bf16.msra.mxu0 %v707
    %985 = vmatprep.subr.bf16.mxu0 0
    %986 = vmatpush1.bf16.msra.mxu0 %v708
    %987 = vmatprep.subr.bf16.mxu0 0
    %988 = vmatpush1.bf16.msra.mxu0 %v709
    %989 = vmatprep.subr.bf16.mxu0 0
    %990 = vmatpush1.bf16.msra.mxu0 %v710
    %991 = vmatprep.mubr.bf16.mxu0 %v246
    %992 = vmatmul.mubr.bf16.gmra.mrb[0].mxu0 %v245
    %v993 = vpop.f32.mrb[0].mxu0
    %v994 = vadd.f32 %v954, %v993
    %v995 = vpop.f32.mrb[0].mxu0
    %v996 = vpop.f32.mrb[0].mxu0
    %v997 = vpop.f32.mrb[0].mxu0
    %998 = vdwg.mxu0
    %999 = vmatprep.subr.bf16.mxu0 0
    %1000 = vmatpush1.bf16.msra.mxu0 %v711
    %1001 = vmatprep.subr.bf16.mxu0 0
    %1002 = vmatpush1.bf16.msra.mxu0 %v712
    %1003 = vmatprep.subr.bf16.mxu0 0
    %1004 = vmatpush1.bf16.msra.mxu0 %v713
    %1005 = vmatprep.subr.bf16.mxu0 0
    %1006 = vmatpush1.bf16.msra.mxu0 %v714
    %1007 = vmatprep.subr.bf16.mxu0 0
    %1008 = vmatpush1.bf16.msra.mxu0 %v715
    %1009 = vmatprep.subr.bf16.mxu0 0
    %1010 = vmatpush1.bf16.msra.mxu0 %v716
    %1011 = vmatprep.subr.bf16.mxu0 0
    %1012 = vmatpush1.bf16.msra.mxu0 %v717
    %1013 = vmatprep.subr.bf16.mxu0 0
    %1014 = vmatpush1.bf16.msra.mxu0 %v718
    %1015 = vmatprep.subr.bf16.mxu0 0
    %1016 = vmatpush1.bf16.msra.mxu0 %v719
    %1017 = vmatprep.subr.bf16.mxu0 0
    %1018 = vmatpush1.bf16.msra.mxu0 %v720
    %1019 = vmatprep.subr.bf16.mxu0 0
    %1020 = vmatpush1.bf16.msra.mxu0 %v721
    %1021 = vmatprep.subr.bf16.mxu0 0
    %1022 = vmatpush1.bf16.msra.mxu0 %v722
    %1023 = vmatprep.subr.bf16.mxu0 0
    %1024 = vmatpush1.bf16.msra.mxu0 %v723
    %1025 = vmatprep.subr.bf16.mxu0 0
    %1026 = vmatpush1.bf16.msra.mxu0 %v724
    %1027 = vmatprep.subr.bf16.mxu0 0
    %1028 = vmatpush1.bf16.msra.mxu0 %v725
    %1029 = vmatprep.subr.bf16.mxu0 0
    %1030 = vmatpush1.bf16.msra.mxu0 %v726
    %1031 = vmatprep.mubr.bf16.mxu0 %v248
    %1032 = vmatmul.mubr.bf16.gmra.mrb[0].mxu0 %v247
    %v1033 = vpop.f32.mrb[0].mxu0
    %v1034 = vadd.f32 %v994, %v1033
    %v1035 = vpop.f32.mrb[0].mxu0
    %v1036 = vpop.f32.mrb[0].mxu0
    %v1037 = vpop.f32.mrb[0].mxu0
    %1038 = vdwg.mxu0
    %1039 = vmatprep.subr.bf16.mxu0 0
    %1040 = vmatpush1.bf16.msra.mxu0 %v727
    %1041 = vmatprep.subr.bf16.mxu0 0
    %1042 = vmatpush1.bf16.msra.mxu0 %v728
    %1043 = vmatprep.subr.bf16.mxu0 0
    %1044 = vmatpush1.bf16.msra.mxu0 %v729
    %1045 = vmatprep.subr.bf16.mxu0 0
    %1046 = vmatpush1.bf16.msra.mxu0 %v730
    %1047 = vmatprep.subr.bf16.mxu0 0
    %1048 = vmatpush1.bf16.msra.mxu0 %v731
    %1049 = vmatprep.subr.bf16.mxu0 0
    %1050 = vmatpush1.bf16.msra.mxu0 %v732
    %1051 = vmatprep.subr.bf16.mxu0 0
    %1052 = vmatpush1.bf16.msra.mxu0 %v733
    %1053 = vmatprep.subr.bf16.mxu0 0
    %1054 = vmatpush1.bf16.msra.mxu0 %v734
    %1055 = vmatprep.subr.bf16.mxu0 0
    %1056 = vmatpush1.bf16.msra.mxu0 %v735
    %1057 = vmatprep.subr.bf16.mxu0 0
    %1058 = vmatpush1.bf16.msra.mxu0 %v736
    %1059 = vmatprep.subr.bf16.mxu0 0
    %1060 = vmatpush1.bf16.msra.mxu0 %v737
    %1061 = vmatprep.subr.bf16.mxu0 0
    %1062 = vmatpush1.bf16.msra.mxu0 %v738
    %1063 = vmatprep.subr.bf16.mxu0 0
    %1064 = vmatpush1.bf16.msra.mxu0 %v739
    %1065 = vmatprep.subr.bf16.mxu0 0
    %1066 = vmatpush1.bf16.msra.mxu0 %v740
    %1067 = vmatprep.subr.bf16.mxu0 0
    %1068 = vmatpush1.bf16.msra.mxu0 %v741
    %1069 = vmatprep.subr.bf16.mxu0 0
    %1070 = vmatpush1.bf16.msra.mxu0 %v742
    %1071 = vmatprep.mubr.bf16.mxu0 %v250
    %1072 = vmatmul.mubr.bf16.gmra.mrb[0].mxu0 %v249
    %v1073 = vpop.f32.mrb[0].mxu0
    %v1074 = vadd.f32 %v1034, %v1073
    %v1075 = vpop.f32.mrb[0].mxu0
    %v1076 = vpop.f32.mrb[0].mxu0
    %v1077 = vpop.f32.mrb[0].mxu0
    %1078 = vdwg.mxu0
    %vm1079 = vcmask 130048
    %1080 = vst.msk [vmem:[#allocation2] sm:$0xff] %vm1079, %v1074
    // Predicated region
    $region14: #{tpu_custom_call.1} parent=1 // pred_check
      _
    $region15: #{tpu_custom_call.1} parent=1 // pred_check_branch
      %1082 = sbr.rel (0) target = $region17
    $region16: #{tpu_custom_call.1} parent=1 // pred_region
      %s1084 = ssub.s32 128, 128
      %1085 = vsyncadd [#allocation3], %s1084
      %s1087 = sshll.u32 [#allocation2], 4
      %s1088 = int_to_ptr.vmem [resolvable:$true] %s1087
      %1090 = dma.vmem_to_hbm [thread:$0]  %s1088, 128, %s3, [#allocation3]
    $region17: #{tpu_custom_call.1} parent=1 // pred_fallthru
      _
    // Predicated region
    $region18: #{tpu_custom_call.1} parent=1 // pred_check
      _
    $region19: #{tpu_custom_call.1} parent=1 // pred_check_branch
      %1092 = sbr.rel (0) target = $region21
    $region20: #{tpu_custom_call.1} parent=1 // pred_region
      %1093 = dma.done [#allocation3], 128
    $region21: #{tpu_custom_call.1} parent=1 // pred_fallthru
      _
    %1094 = vsyncpa [#allocation3], 1

</llo_original>
